<compile_context>
chip_gen: v7x
topology: tpu7x:2x2x1
jax: 0.10.0
libtpu: 0.0.40
codegen_flags: <defaults>
</compile_context>

<pallas_src>
import math

import jax
import jax.numpy as jnp
from jax.experimental import pallas as pl
from jax.experimental.pallas import tpu as pltpu


def make_positional_encoding(d_model: int, max_length: int) -> jnp.ndarray:
    """Sinusoidal PE table (max_length, d_model); handles odd d_model cleanly."""
    position = jnp.arange(max_length, dtype=jnp.float32)[:, None]            # (L, 1)
    div_term = jnp.exp(
        jnp.arange(0, d_model, 2, dtype=jnp.float32) * -(math.log(10000.0) / d_model)
    )                                                                        # (ceil(D/2),)
    angles = position * div_term                                             # (L, ceil(D/2))
    pe = jnp.zeros((max_length, d_model), dtype=jnp.float32)
    pe = pe.at[:, 0::2].set(jnp.sin(angles))
    pe = pe.at[:, 1::2].set(jnp.cos(angles)[:, : d_model // 2])
    return pe


def _add_pe_kernel(x_ref, pe_ref, o_ref):
    # x_ref / o_ref: (TILE_B, TILE_F); pe_ref: (1, TILE_F) broadcast over the
    # batch rows (sublanes). Single full-vreg VPU add per block; on v5e a bf16
    # input is widened by the compiler, on v6e/v7x the bf16 VALU path is used.
    o_ref[...] = x_ref[...] + pe_ref[...]


def _pick_flat_tile(total: int, limit: int, row_tile: int, itemsize: int) -> int:
    """Largest divisor of `total` <= limit that is a multiple of 128 (lane-dense).

    Falls back to the full flat axis (always a legal block shape) or, if that
    would be too large, to the largest divisor <= limit.
    """
    limit = max(1, min(total, limit))
    largest_divisor = None
    for t in range(limit, 0, -1):
        if total % t == 0:
            if t % 128 == 0:
                return t
            if largest_divisor is None:
                largest_divisor = t
    if total * row_tile * itemsize <= (16 << 20):
        return total
    return largest_divisor if largest_divisor is not None else total


def positional_encoding_forward(
    x: jnp.ndarray,
    pe: jnp.ndarray,
    *,
    target_block_bytes: int = 1 << 20,   # ~1 MiB/block: near-roofline, VMEM-safe everywhere
    donate_x: bool = False,
) -> jnp.ndarray:
    """x: (B, S, D); pe: (max_length, D). Returns x + pe[None, :S, :]."""
    B, S, D = x.shape
    assert pe.shape[0] >= S and pe.shape[1] == D, "pe table too small for input"

    F = S * D
    itemsize = jnp.dtype(x.dtype).itemsize

    # Row-major flatten: free (no data movement); makes the lane axis dense for any D.
    x_flat = x.reshape(B, F)
    pe_flat = pe[:S, :].astype(x.dtype).reshape(1, F)   # match x dtype (bf16-safe)

    # Batch tile (sublane axis of the block): full batch if small, else groups of 8.
    if B <= 8:
        tile_b = B
    elif B % 8 == 0:
        tile_b = 8
    else:
        tile_b = B   # full dim is always a legal block shape

    # Flat tile (lane axis): ~target_block_bytes per block, multiple of 128.
    limit = max(128, target_block_bytes // max(1, tile_b * itemsize))
    tile_f = _pick_flat_tile(F, limit, tile_b, itemsize)

    # Flat-tile axis outer, batch axis inner -> the pe block index is constant
    # across the inner loop, so each pe tile is DMA'd once and stays resident.
    grid = (F // tile_f, B // tile_b)

    block_bytes = tile_b * tile_f * itemsize
    pe_block_bytes = tile_f * itemsize
    # Double-buffered x, out and pe blocks plus generous headroom, capped so it
    # is safe even on v7x (64 MiB physical VMEM per TensorCore).
    vmem_limit = int(min(32 << 20, max(8 << 20, 4 * (2 * block_bytes + pe_block_bytes))))

    out_flat = pl.pallas_call(
        _add_pe_kernel,
        out_shape=jax.ShapeDtypeStruct((B, F), x.dtype),
        grid_spec=pltpu.PrefetchScalarGridSpec(
            num_scalar_prefetch=0,
            grid=grid,
            in_specs=[
                pl.BlockSpec((tile_b, tile_f), lambda f, b: (b, f)),
                pl.BlockSpec((1, tile_f), lambda f, b: (0, f)),
            ],
            out_specs=pl.BlockSpec((tile_b, tile_f), lambda f, b: (b, f)),
        ),
        compiler_params=pltpu.CompilerParams(
            dimension_semantics=("parallel", "parallel"),
            vmem_limit_bytes=vmem_limit,
        ),
        input_output_aliases=({0: 0} if donate_x else {}),
    )(x_flat, pe_flat)

    return out_flat.reshape(B, S, D)


if __name__ == "__main__":
    d_model = 32
    max_length = 16
    batch = 2
    seq = 8

    key = jax.random.PRNGKey(0)
    x = jax.random.normal(key, (batch, seq, d_model), dtype=jnp.float32)
    pe = make_positional_encoding(d_model, max_length)

    # f32 path (matches the PyTorch module's default dtype).
    out = jax.block_until_ready(positional_encoding_forward(x, pe))
    ref = x + pe[None, :seq, :]
    assert out.shape == (batch, seq, d_model)
    assert jnp.allclose(out, ref, atol=1e-6), "f32 mismatch vs reference"

    # bf16 path: pe is cast to x.dtype inside the wrapper, add stays packed.
    x_bf16 = x.astype(jnp.bfloat16)
    out_bf16 = jax.block_until_ready(positional_encoding_forward(x_bf16, pe))
    ref_bf16 = x_bf16 + pe[None, :seq, :].astype(jnp.bfloat16)
    assert jnp.allclose(
        out_bf16.astype(jnp.float32), ref_bf16.astype(jnp.float32), atol=1e-2
    ), "bf16 mismatch vs reference"

    # Multi-step grid: tiny target block forces several flat tiles (exercises tiling).
    x2 = jax.random.normal(jax.random.PRNGKey(0), (4, 64, 96), dtype=jnp.float32)
    pe2 = make_positional_encoding(96, 128)
    out2 = jax.block_until_ready(
        positional_encoding_forward(x2, pe2, target_block_bytes=8 * 1024)
    )
    ref2 = x2 + pe2[None, :64, :]
    assert jnp.allclose(out2, ref2, atol=1e-6), "tiled mismatch vs reference"

    print("KERNEL_OK")
</pallas_src>

<mosaic_0001>
module attributes {stable_mosaic.version = 11 : i64} {
  func.func @_add_pe_kernel(%arg0: i32, %arg1: i32, %arg2: memref<2x256xf32, #tpu.memory_space<vmem>>, %arg3: memref<1x256xf32, #tpu.memory_space<vmem>>, %arg4: memref<2x256xf32, #tpu.memory_space<vmem>>) attributes {dimension_semantics = [#tpu.dimension_semantics<parallel>, #tpu.dimension_semantics<parallel>], iteration_bounds = array<i64: 1, 1>, scalar_prefetch = 0 : i64, scratch_operands = 0 : i64, tpu.core_type = #tpu.core_type<tc>, window_params = [{transform_indices = @transform_0, window_bounds = array<i64: 2, 256>}, {transform_indices = @transform_1, window_bounds = array<i64: 1, 256>}, {transform_indices = @transform_2, window_bounds = array<i64: 2, 256>}]} {
    %c0 = arith.constant 0 : index
    %c0_0 = arith.constant 0 : index
    %0 = vector.load %arg2[%c0, %c0_0] : memref<2x256xf32, #tpu.memory_space<vmem>>, vector<2x256xf32>
    %c0_1 = arith.constant 0 : index
    %c0_2 = arith.constant 0 : index
    %1 = vector.load %arg3[%c0_1, %c0_2] : memref<1x256xf32, #tpu.memory_space<vmem>>, vector<1x256xf32>
    %2 = vector.broadcast %1 : vector<1x256xf32> to vector<2x256xf32>
    %3 = arith.addf %0, %2 : vector<2x256xf32>
    %c0_3 = arith.constant 0 : index
    %c0_4 = arith.constant 0 : index
    %4 = vector.load %arg4[%c0_3, %c0_4] : memref<2x256xf32, #tpu.memory_space<vmem>>, vector<2x256xf32>
    tpu.vector_store %arg4[%c0_3, %c0_4], %3 {strides = array<i32>} : memref<2x256xf32, #tpu.memory_space<vmem>>, vector<2x256xf32>,
    return
  }
  func.func @transform_0(%arg0: i32, %arg1: i32) -> (i32, i32) {
    %c0_i32 = arith.constant 0 : i32
    return %arg1, %arg0 : i32, i32
  }
  func.func @transform_1(%arg0: i32, %arg1: i32) -> (i32, i32) {
    %c0_i32 = arith.constant 0 : i32
    %c0_i32_0 = arith.constant 0 : i32
    return %c0_i32, %arg0 : i32, i32
  }
  func.func @transform_2(%arg0: i32, %arg1: i32) -> (i32, i32) {
    %c0_i32 = arith.constant 0 : i32
    return %arg1, %arg0 : i32, i32
  }
}

</mosaic_0001>

<llo_original>
// kernel: tpu_custom_call.1
$region0: #{tpu_custom_call.1}
  #allocation0 [shape = 'u32[]', space=smem, size = 0x4, offset = 0x4, fixed_abs, tag = 'smem constant byte address 0x4 - core index']
  #allocation1 [shape = 'u32[144,128]{1,0:T(1,128)}', space=vmem, size = 0x12000, scoped, tag = 'internal scratch']
  %s0 = inlined_call_operand.hbm [shape: f32[2,256], index: 0, kind: input, shape index: {}]
  %s1 = inlined_call_operand.vmem [shape: f32[1,256], index: 1, kind: input, shape index: {}]
  %s2 = inlined_call_operand.hbm [shape: f32[2,256], index: 2, kind: output, shape index: {}]
  %s3 = sld [smem:[#allocation0]]
  $region22: #{tpu_custom_call.1} parent=0
    _
  %s5 = ssub.s32 1, %s3
  %s6 = scalar_select 0, %s5, %s3
  $region1: #{tpu_custom_call.1} parent=0
    #allocation2 [shape = 'u8[2048]{0}', space=vmem, size = 0x800, scoped, tag = 'input window, operand 0, single buffered']
    #allocation3 [shape = 's32[1]{0}', space=sflag, size = 0x4, scoped, tag = 'scoped memory for tpu_custom_call.1']
    #allocation4 [shape = 's32[1]{0}', space=sflag, size = 0x4, scoped, tag = 'scoped memory for tpu_custom_call.1']
    #allocation5 [shape = 'u8[2048]{0}', space=vmem, size = 0x800, scoped, tag = 'output window, operand 0, single buffered']
    %7 = vsyncpa [#allocation3], 0
    %8 = vsyncpa [#allocation4], 0
    // Predicated region
    $region2: #{tpu_custom_call.1} parent=1 // pred_check
      _
    $region3: #{tpu_custom_call.1} parent=1 // pred_check_branch
      %10 = sbr.rel (0) target = $region5
    $region4: #{tpu_custom_call.1} parent=1 // pred_region
      %s12 = ssub.s32 64, 64
      %13 = vsyncadd [#allocation3], %s12
      %s15 = sshll.u32 [#allocation2], 4
      %s16 = int_to_ptr.vmem [resolvable:$true] %s15
      %18 = dma.hbm_to_vmem [thread:$0]  %s0, 64, %s16, [#allocation3]
    $region5: #{tpu_custom_call.1} parent=1 // pred_fallthru
      _
    // Predicated region
    $region6: #{tpu_custom_call.1} parent=1 // pred_check
      _
    $region7: #{tpu_custom_call.1} parent=1 // pred_check_branch
      %20 = sbr.rel (0) target = $region9
    $region8: #{tpu_custom_call.1} parent=1 // pred_region
      _
    $region9: #{tpu_custom_call.1} parent=1 // pred_fallthru
      _
    // Predicated region
    $region10: #{tpu_custom_call.1} parent=1 // pred_check
      _
    $region11: #{tpu_custom_call.1} parent=1 // pred_check_branch
      %22 = sbr.rel (0) target = $region13
    $region12: #{tpu_custom_call.1} parent=1 // pred_region
      %23 = dma.done [#allocation3], 64
    $region13: #{tpu_custom_call.1} parent=1 // pred_fallthru
      _
    %v24 = vld [vmem:[#allocation2] sm:$0xf]
    %v25 = vld [vmem:[%s1] sm:$0x3]
    %v27 = vlaneseq
    %v28 = vshrl.u32 %v27, 7
    %v29 = vsub.s32 0, %v28
    %v30 = vrot.slane %v25, %v29
    %v31 = vlaneseq
    %v32 = vshrl.u32 %v31, 7
    %v33 = vsub.s32 1, %v32
    %v34 = vrot.slane %v25, %v33
    %v35 = vcombine.low %v30, %v34
    %v37 = vunpack.c.l.s4 1983009808
    %v38 = vunpack.c.0.s8 %v37
    %v39 = vlaneseq
    %v40 = vshrl.u32 %v39, 7
    %v41 = vsub.s32 %v38, %v40
    %v42 = vrot.slane %v35, %v41
    %v44 = vadd.f32 %v24, %v42
    %45 = vst [vmem:[#allocation5] sm:$0xf] %v44
    // Predicated region
    $region14: #{tpu_custom_call.1} parent=1 // pred_check
      _
    $region15: #{tpu_custom_call.1} parent=1 // pred_check_branch
      %47 = sbr.rel (0) target = $region17
    $region16: #{tpu_custom_call.1} parent=1 // pred_region
      %s49 = ssub.s32 64, 64
      %50 = vsyncadd [#allocation4], %s49
      %s52 = sshll.u32 [#allocation5], 4
      %s53 = int_to_ptr.vmem [resolvable:$true] %s52
      %55 = dma.vmem_to_hbm [thread:$0]  %s53, 64, %s2, [#allocation4]
    $region17: #{tpu_custom_call.1} parent=1 // pred_fallthru
      _
    // Predicated region
    $region18: #{tpu_custom_call.1} parent=1 // pred_check
      _
    $region19: #{tpu_custom_call.1} parent=1 // pred_check_branch
      %57 = sbr.rel (0) target = $region21
    $region20: #{tpu_custom_call.1} parent=1 // pred_region
      %58 = dma.done [#allocation4], 64
    $region21: #{tpu_custom_call.1} parent=1 // pred_fallthru
      _
    %59 = vsyncpa [#allocation3], 1
    %60 = vsyncpa [#allocation4], 1

</llo_original>
